<compile_context>
chip_gen: v5e
topology: v5e:2x2
jax: 0.10.0
libtpu: 0.0.40
codegen_flags: <defaults>
</compile_context>

<pallas_src>
import functools

import jax
import jax.numpy as jnp
from jax.experimental import pallas as pl
from jax.experimental.pallas import tpu as pltpu

# Layer sizes of the autoencoder:
#   encoder: 200 -> 100 -> (tanh) -> 50 -> (tanh) -> 10
#   decoder: 10  -> 50  -> (tanh) -> 100 -> (tanh) -> 200
ENC_DIMS = [(200, 100), (100, 50), (50, 10)]
DEC_DIMS = [(10, 50), (50, 100), (100, 200)]


def _round_up(x, m):
    return ((x + m - 1) // m) * m


def _num_tensorcores():
    """Best-effort TensorCore-per-device count (2 on v7x / megacore parts)."""
    try:
        dev = jax.devices()[0]
    except Exception:
        return 1
    n = getattr(dev, "num_cores", None)
    if isinstance(n, int) and n > 0:
        return n
    kind = str(getattr(dev, "device_kind", "")).lower()
    if any(tag in kind for tag in ("v4", "v5p", "7x", "v7")):
        return 2
    return 1


def autoencoder_kernel(x_ref,
                       w1, b1, w2, b2, w3, b3,   # encoder params
                       w4, b4, w5, b5, w6, b6,   # decoder params
                       enc_ref, dec_ref):
    f32 = jnp.float32
    bf16 = jnp.bfloat16

    x = x_ref[...].astype(bf16)

    # ---- encoder ----  (bf16 MXU operands, f32 accumulation, f32 bias+tanh)
    h = jnp.tanh(jnp.dot(x, w1[...], preferred_element_type=f32) + b1[...])
    h = jnp.tanh(jnp.dot(h.astype(bf16), w2[...], preferred_element_type=f32) + b2[...])
    enc = jnp.dot(h.astype(bf16), w3[...], preferred_element_type=f32) + b3[...]   # (bb, 10)

    # ---- decoder ----
    h = jnp.tanh(jnp.dot(enc.astype(bf16), w4[...], preferred_element_type=f32) + b4[...])
    h = jnp.tanh(jnp.dot(h.astype(bf16), w5[...], preferred_element_type=f32) + b5[...])
    dec = jnp.dot(h.astype(bf16), w6[...], preferred_element_type=f32) + b6[...]    # (bb, 200)

    enc_ref[...] = enc.astype(enc_ref.dtype)
    dec_ref[...] = dec.astype(dec_ref.dtype)


@functools.partial(jax.jit, static_argnames=("block_b",))
def autoencoder_forward(x, params, *, block_b=2048):
    B, D_in = x.shape
    assert D_in == 200

    # ---- pick the batch tile ------------------------------------------------
    # Biggest tile (<= block_b) that covers the batch, rounded to the sublane (8).
    bb = min(block_b, _round_up(max(B, 8), 8))
    # On multi-TensorCore chips (v7x / megacore), keep >= n_cores grid steps so
    # the "parallel" batch axis can be sharded across cores. On single-TC chips
    # (v5e/v6e) the grid is a serial loop, so use the single biggest tile.
    n_cores = _num_tensorcores()
    if n_cores > 1 and pl.cdiv(B, bb) < n_cores and bb >= 16:
        bb = max(8, _round_up(pl.cdiv(B, n_cores), 8))
    grid = pl.cdiv(B, bb)   # partial last block handled by Pallas (masked writes)

    # ---- prepare parameters (cast weights to bf16 once, f32 bias rows) ------
    (w1, b1), (w2, b2), (w3, b3), (w4, b4), (w5, b5), (w6, b6) = params
    weights = [w1, w2, w3, w4, w5, w6]
    biases = [b1, b2, b3, b4, b5, b6]

    flat_params = []
    for w, b in zip(weights, biases):
        flat_params.append(w.astype(jnp.bfloat16))                  # MXU operand
        flat_params.append(b.astype(jnp.float32).reshape(1, -1))    # f32 bias row

    # ---- BlockSpecs ----------------------------------------------------------
    x_spec = pl.BlockSpec((bb, D_in), lambda i: (i, 0))
    # Constant block index -> params loaded once, stay resident in VMEM.
    param_specs = [pl.BlockSpec(p.shape, lambda i: (0, 0)) for p in flat_params]
    # True-shape outputs (last dim == full array dim is legal).
    enc_spec = pl.BlockSpec((bb, 10), lambda i: (i, 0))
    dec_spec = pl.BlockSpec((bb, 200), lambda i: (i, 0))

    out_shape = (jax.ShapeDtypeStruct((B, 10), x.dtype),
                 jax.ShapeDtypeStruct((B, 200), x.dtype))

    encoded, decoded = pl.pallas_call(
        autoencoder_kernel,
        out_shape=out_shape,
        grid_spec=pltpu.PrefetchScalarGridSpec(
            num_scalar_prefetch=0,
            grid=(grid,),
            in_specs=[x_spec] + param_specs,
            out_specs=[enc_spec, dec_spec],
        ),
        compiler_params=pltpu.CompilerParams(
            dimension_semantics=("parallel",),
            # ~15-20 MiB footprint at bb=2048; 32 MiB leaves headroom for
            # Mosaic scratch/spill and is safe on v7x's 64 MiB physical VMEM.
            vmem_limit_bytes=32 * 1024 * 1024,
        ),
    )(x, *flat_params)

    return encoded, decoded


def init_linear(key, in_f, out_f):
    """PyTorch nn.Linear default init: U(-1/sqrt(in_f), 1/sqrt(in_f))."""
    kw, kb = jax.random.split(key)
    bound = 1.0 / jnp.sqrt(jnp.float32(in_f))
    w = jax.random.uniform(kw, (in_f, out_f), jnp.float32, -bound, bound)
    b = jax.random.uniform(kb, (out_f,), jnp.float32, -bound, bound)
    return w, b


def reference_forward(x, params):
    """Plain-JAX reference mirroring the kernel's bf16-operand / f32-accum matmuls."""
    def lin(h, w, b):
        return jnp.dot(h.astype(jnp.bfloat16), w.astype(jnp.bfloat16),
                       preferred_element_type=jnp.float32) + b

    (w1, b1), (w2, b2), (w3, b3), (w4, b4), (w5, b5), (w6, b6) = params
    h = jnp.tanh(lin(x, w1, b1))
    h = jnp.tanh(lin(h, w2, b2))
    enc = lin(h, w3, b3)
    h = jnp.tanh(lin(enc, w4, b4))
    h = jnp.tanh(lin(h, w5, b5))
    dec = lin(h, w6, b6)
    return enc, dec


if __name__ == "__main__":
    key = jax.random.PRNGKey(0)
    keys = jax.random.split(key, 7)

    # Deterministic parameter init (6 Linear layers).
    params = []
    for k, (fi, fo) in zip(keys[:6], ENC_DIMS + DEC_DIMS):
        params.append(init_linear(k, fi, fo))

    # Small batch, feature dim 200 as the module's forward implies.
    B = 16
    x = jax.random.normal(keys[6], (B, 200), jnp.float32)

    encoded, decoded = autoencoder_forward(x, params)
    jax.block_until_ready((encoded, decoded))

    # Correctness check against a plain-JAX reference with matching bf16 matmul numerics.
    enc_ref, dec_ref = reference_forward(x, params)
    assert encoded.shape == (B, 10) and decoded.shape == (B, 200)
    assert jnp.allclose(encoded, enc_ref, atol=1e-3, rtol=1e-3)
    assert jnp.allclose(decoded, dec_ref, atol=1e-3, rtol=1e-3)

    # Also exercise a ragged batch (partial last grid block, no zero-pad pass).
    Br = 13
    xr = jax.random.normal(jax.random.PRNGKey(1), (Br, 200), jnp.float32)
    enc_r, dec_r = autoencoder_forward(xr, params)
    jax.block_until_ready((enc_r, dec_r))
    enc_rr, dec_rr = reference_forward(xr, params)
    assert enc_r.shape == (Br, 10) and dec_r.shape == (Br, 200)
    assert jnp.allclose(enc_r, enc_rr, atol=1e-3, rtol=1e-3)
    assert jnp.allclose(dec_r, dec_rr, atol=1e-3, rtol=1e-3)

    print("KERNEL_OK")
</pallas_src>

<mosaic_0001>
module attributes {stable_mosaic.version = 11 : i64} {
  func.func @autoencoder_kernel(%arg0: i32, %arg1: memref<16x200xf32, #tpu.memory_space<vmem>>, %arg2: memref<200x100xbf16, #tpu.memory_space<vmem>>, %arg3: memref<1x100xf32, #tpu.memory_space<vmem>>, %arg4: memref<100x50xbf16, #tpu.memory_space<vmem>>, %arg5: memref<1x50xf32, #tpu.memory_space<vmem>>, %arg6: memref<50x10xbf16, #tpu.memory_space<vmem>>, %arg7: memref<1x10xf32, #tpu.memory_space<vmem>>, %arg8: memref<10x50xbf16, #tpu.memory_space<vmem>>, %arg9: memref<1x50xf32, #tpu.memory_space<vmem>>, %arg10: memref<50x100xbf16, #tpu.memory_space<vmem>>, %arg11: memref<1x100xf32, #tpu.memory_space<vmem>>, %arg12: memref<100x200xbf16, #tpu.memory_space<vmem>>, %arg13: memref<1x200xf32, #tpu.memory_space<vmem>>, %arg14: memref<16x10xf32, #tpu.memory_space<vmem>>, %arg15: memref<16x200xf32, #tpu.memory_space<vmem>>) attributes {dimension_semantics = [#tpu.dimension_semantics<parallel>], iteration_bounds = array<i64: 1>, scalar_prefetch = 0 : i64, scratch_operands = 0 : i64, tpu.core_type = #tpu.core_type<tc>, window_params = [{transform_indices = @transform_0, window_bounds = array<i64: 16, 200>}, {pipeline_mode = #tpu.pipeline_mode<synchronous>, transform_indices = @transform_1, window_bounds = array<i64: 200, 100>}, {pipeline_mode = #tpu.pipeline_mode<synchronous>, transform_indices = @transform_2, window_bounds = array<i64: 1, 100>}, {pipeline_mode = #tpu.pipeline_mode<synchronous>, transform_indices = @transform_3, window_bounds = array<i64: 100, 50>}, {pipeline_mode = #tpu.pipeline_mode<synchronous>, transform_indices = @transform_4, window_bounds = array<i64: 1, 50>}, {pipeline_mode = #tpu.pipeline_mode<synchronous>, transform_indices = @transform_5, window_bounds = array<i64: 50, 10>}, {pipeline_mode = #tpu.pipeline_mode<synchronous>, transform_indices = @transform_6, window_bounds = array<i64: 1, 10>}, {pipeline_mode = #tpu.pipeline_mode<synchronous>, transform_indices = @transform_7, window_bounds = array<i64: 10, 50>}, {pipeline_mode = #tpu.pipeline_mode<synchronous>, transform_indices = @transform_8, window_bounds = array<i64: 1, 50>}, {pipeline_mode = #tpu.pipeline_mode<synchronous>, transform_indices = @transform_9, window_bounds = array<i64: 50, 100>}, {pipeline_mode = #tpu.pipeline_mode<synchronous>, transform_indices = @transform_10, window_bounds = array<i64: 1, 100>}, {pipeline_mode = #tpu.pipeline_mode<synchronous>, transform_indices = @transform_11, window_bounds = array<i64: 100, 200>}, {pipeline_mode = #tpu.pipeline_mode<synchronous>, transform_indices = @transform_12, window_bounds = array<i64: 1, 200>}, {transform_indices = @transform_13, window_bounds = array<i64: 16, 10>}, {transform_indices = @transform_14, window_bounds = array<i64: 16, 200>}]} {
    %c0 = arith.constant 0 : index
    %c0_0 = arith.constant 0 : index
    %0 = vector.load %arg1[%c0, %c0_0] : memref<16x200xf32, #tpu.memory_space<vmem>>, vector<16x200xf32>
    %1 = arith.truncf %0 : vector<16x200xf32> to vector<16x200xbf16>
    %c0_1 = arith.constant 0 : index
    %c0_2 = arith.constant 0 : index
    %2 = vector.load %arg2[%c0_1, %c0_2] : memref<200x100xbf16, #tpu.memory_space<vmem>>, vector<200x100xbf16>
    %cst = arith.constant dense<0.000000e+00> : vector<16x100xf32>
    %3 = tpu.matmul %1, %2, %cst {dimension_numbers = #tpu.dot_dimension_numbers<[1], [0], [0], [1], [0, 0, 1, 1], [], []>} : vector<16x200xbf16>, vector<200x100xbf16>, vector<16x100xf32> -> vector<16x100xf32>
    %c0_3 = arith.constant 0 : index
    %c0_4 = arith.constant 0 : index
    %4 = vector.load %arg3[%c0_3, %c0_4] : memref<1x100xf32, #tpu.memory_space<vmem>>, vector<1x100xf32>
    %5 = vector.broadcast %4 : vector<1x100xf32> to vector<16x100xf32>
    %6 = arith.addf %3, %5 : vector<16x100xf32>
    %7 = math.tanh %6 : vector<16x100xf32>
    %8 = arith.truncf %7 : vector<16x100xf32> to vector<16x100xbf16>
    %c0_5 = arith.constant 0 : index
    %c0_6 = arith.constant 0 : index
    %9 = vector.load %arg4[%c0_5, %c0_6] : memref<100x50xbf16, #tpu.memory_space<vmem>>, vector<100x50xbf16>
    %cst_7 = arith.constant dense<0.000000e+00> : vector<16x50xf32>
    %10 = tpu.matmul %8, %9, %cst_7 {dimension_numbers = #tpu.dot_dimension_numbers<[1], [0], [0], [1], [0, 0, 1, 1], [], []>} : vector<16x100xbf16>, vector<100x50xbf16>, vector<16x50xf32> -> vector<16x50xf32>
    %c0_8 = arith.constant 0 : index
    %c0_9 = arith.constant 0 : index
    %11 = vector.load %arg5[%c0_8, %c0_9] : memref<1x50xf32, #tpu.memory_space<vmem>>, vector<1x50xf32>
    %12 = vector.broadcast %11 : vector<1x50xf32> to vector<16x50xf32>
    %13 = arith.addf %10, %12 : vector<16x50xf32>
    %14 = math.tanh %13 : vector<16x50xf32>
    %15 = arith.truncf %14 : vector<16x50xf32> to vector<16x50xbf16>
    %c0_10 = arith.constant 0 : index
    %c0_11 = arith.constant 0 : index
    %16 = vector.load %arg6[%c0_10, %c0_11] : memref<50x10xbf16, #tpu.memory_space<vmem>>, vector<50x10xbf16>
    %cst_12 = arith.constant dense<0.000000e+00> : vector<16x10xf32>
    %17 = tpu.matmul %15, %16, %cst_12 {dimension_numbers = #tpu.dot_dimension_numbers<[1], [0], [0], [1], [0, 0, 1, 1], [], []>} : vector<16x50xbf16>, vector<50x10xbf16>, vector<16x10xf32> -> vector<16x10xf32>
    %c0_13 = arith.constant 0 : index
    %c0_14 = arith.constant 0 : index
    %18 = vector.load %arg7[%c0_13, %c0_14] : memref<1x10xf32, #tpu.memory_space<vmem>>, vector<1x10xf32>
    %19 = vector.broadcast %18 : vector<1x10xf32> to vector<16x10xf32>
    %20 = arith.addf %17, %19 : vector<16x10xf32>
    %21 = arith.truncf %20 : vector<16x10xf32> to vector<16x10xbf16>
    %c0_15 = arith.constant 0 : index
    %c0_16 = arith.constant 0 : index
    %22 = vector.load %arg8[%c0_15, %c0_16] : memref<10x50xbf16, #tpu.memory_space<vmem>>, vector<10x50xbf16>
    %cst_17 = arith.constant dense<0.000000e+00> : vector<16x50xf32>
    %23 = tpu.matmul %21, %22, %cst_17 {dimension_numbers = #tpu.dot_dimension_numbers<[1], [0], [0], [1], [0, 0, 1, 1], [], []>} : vector<16x10xbf16>, vector<10x50xbf16>, vector<16x50xf32> -> vector<16x50xf32>
    %c0_18 = arith.constant 0 : index
    %c0_19 = arith.constant 0 : index
    %24 = vector.load %arg9[%c0_18, %c0_19] : memref<1x50xf32, #tpu.memory_space<vmem>>, vector<1x50xf32>
    %25 = vector.broadcast %24 : vector<1x50xf32> to vector<16x50xf32>
    %26 = arith.addf %23, %25 : vector<16x50xf32>
    %27 = math.tanh %26 : vector<16x50xf32>
    %28 = arith.truncf %27 : vector<16x50xf32> to vector<16x50xbf16>
    %c0_20 = arith.constant 0 : index
    %c0_21 = arith.constant 0 : index
    %29 = vector.load %arg10[%c0_20, %c0_21] : memref<50x100xbf16, #tpu.memory_space<vmem>>, vector<50x100xbf16>
    %cst_22 = arith.constant dense<0.000000e+00> : vector<16x100xf32>
    %30 = tpu.matmul %28, %29, %cst_22 {dimension_numbers = #tpu.dot_dimension_numbers<[1], [0], [0], [1], [0, 0, 1, 1], [], []>} : vector<16x50xbf16>, vector<50x100xbf16>, vector<16x100xf32> -> vector<16x100xf32>
    %c0_23 = arith.constant 0 : index
    %c0_24 = arith.constant 0 : index
    %31 = vector.load %arg11[%c0_23, %c0_24] : memref<1x100xf32, #tpu.memory_space<vmem>>, vector<1x100xf32>
    %32 = vector.broadcast %31 : vector<1x100xf32> to vector<16x100xf32>
    %33 = arith.addf %30, %32 : vector<16x100xf32>
    %34 = math.tanh %33 : vector<16x100xf32>
    %35 = arith.truncf %34 : vector<16x100xf32> to vector<16x100xbf16>
    %c0_25 = arith.constant 0 : index
    %c0_26 = arith.constant 0 : index
    %36 = vector.load %arg12[%c0_25, %c0_26] : memref<100x200xbf16, #tpu.memory_space<vmem>>, vector<100x200xbf16>
    %cst_27 = arith.constant dense<0.000000e+00> : vector<16x200xf32>
    %37 = tpu.matmul %35, %36, %cst_27 {dimension_numbers = #tpu.dot_dimension_numbers<[1], [0], [0], [1], [0, 0, 1, 1], [], []>} : vector<16x100xbf16>, vector<100x200xbf16>, vector<16x200xf32> -> vector<16x200xf32>
    %c0_28 = arith.constant 0 : index
    %c0_29 = arith.constant 0 : index
    %38 = vector.load %arg13[%c0_28, %c0_29] : memref<1x200xf32, #tpu.memory_space<vmem>>, vector<1x200xf32>
    %39 = vector.broadcast %38 : vector<1x200xf32> to vector<16x200xf32>
    %40 = arith.addf %37, %39 : vector<16x200xf32>
    %c0_30 = arith.constant 0 : index
    %c0_31 = arith.constant 0 : index
    %41 = vector.load %arg14[%c0_30, %c0_31] : memref<16x10xf32, #tpu.memory_space<vmem>>, vector<16x10xf32>
    tpu.vector_store %arg14[%c0_30, %c0_31], %20 {strides = array<i32>} : memref<16x10xf32, #tpu.memory_space<vmem>>, vector<16x10xf32>,
    %c0_32 = arith.constant 0 : index
    %c0_33 = arith.constant 0 : index
    %42 = vector.load %arg15[%c0_32, %c0_33] : memref<16x200xf32, #tpu.memory_space<vmem>>, vector<16x200xf32>
    tpu.vector_store %arg15[%c0_32, %c0_33], %40 {strides = array<i32>} : memref<16x200xf32, #tpu.memory_space<vmem>>, vector<16x200xf32>,
    return
  }
  func.func @transform_0(%arg0: i32) -> (i32, i32) {
    %c0_i32 = arith.constant 0 : i32
    %c0_i32_0 = arith.constant 0 : i32
    return %arg0, %c0_i32 : i32, i32
  }
  func.func @transform_1(%arg0: i32) -> (i32, i32) {
    %c0_i32 = arith.constant 0 : i32
    %c0_i32_0 = arith.constant 0 : i32
    %c0_i32_1 = arith.constant 0 : i32
    return %c0_i32, %c0_i32_0 : i32, i32
  }
  func.func @transform_2(%arg0: i32) -> (i32, i32) {
    %c0_i32 = arith.constant 0 : i32
    %c0_i32_0 = arith.constant 0 : i32
    %c0_i32_1 = arith.constant 0 : i32
    return %c0_i32, %c0_i32_0 : i32, i32
  }
  func.func @transform_3(%arg0: i32) -> (i32, i32) {
    %c0_i32 = arith.constant 0 : i32
    %c0_i32_0 = arith.constant 0 : i32
    %c0_i32_1 = arith.constant 0 : i32
    return %c0_i32, %c0_i32_0 : i32, i32
  }
  func.func @transform_4(%arg0: i32) -> (i32, i32) {
    %c0_i32 = arith.constant 0 : i32
    %c0_i32_0 = arith.constant 0 : i32
    %c0_i32_1 = arith.constant 0 : i32
    return %c0_i32, %c0_i32_0 : i32, i32
  }
  func.func @transform_5(%arg0: i32) -> (i32, i32) {
    %c0_i32 = arith.constant 0 : i32
    %c0_i32_0 = arith.constant 0 : i32
    %c0_i32_1 = arith.constant 0 : i32
    return %c0_i32, %c0_i32_0 : i32, i32
  }
  func.func @transform_6(%arg0: i32) -> (i32, i32) {
    %c0_i32 = arith.constant 0 : i32
    %c0_i32_0 = arith.constant 0 : i32
    %c0_i32_1 = arith.constant 0 : i32
    return %c0_i32, %c0_i32_0 : i32, i32
  }
  func.func @transform_7(%arg0: i32) -> (i32, i32) {
    %c0_i32 = arith.constant 0 : i32
    %c0_i32_0 = arith.constant 0 : i32
    %c0_i32_1 = arith.constant 0 : i32
    return %c0_i32, %c0_i32_0 : i32, i32
  }
  func.func @transform_8(%arg0: i32) -> (i32, i32) {
    %c0_i32 = arith.constant 0 : i32
    %c0_i32_0 = arith.constant 0 : i32
    %c0_i32_1 = arith.constant 0 : i32
    return %c0_i32, %c0_i32_0 : i32, i32
  }
  func.func @transform_9(%arg0: i32) -> (i32, i32) {
    %c0_i32 = arith.constant 0 : i32
    %c0_i32_0 = arith.constant 0 : i32
    %c0_i32_1 = arith.constant 0 : i32
    return %c0_i32, %c0_i32_0 : i32, i32
  }
  func.func @transform_10(%arg0: i32) -> (i32, i32) {
    %c0_i32 = arith.constant 0 : i32
    %c0_i32_0 = arith.constant 0 : i32
    %c0_i32_1 = arith.constant 0 : i32
    return %c0_i32, %c0_i32_0 : i32, i32
  }
  func.func @transform_11(%arg0: i32) -> (i32, i32) {
    %c0_i32 = arith.constant 0 : i32
    %c0_i32_0 = arith.constant 0 : i32
    %c0_i32_1 = arith.constant 0 : i32
    return %c0_i32, %c0_i32_0 : i32, i32
  }
  func.func @transform_12(%arg0: i32) -> (i32, i32) {
    %c0_i32 = arith.constant 0 : i32
    %c0_i32_0 = arith.constant 0 : i32
    %c0_i32_1 = arith.constant 0 : i32
    return %c0_i32, %c0_i32_0 : i32, i32
  }
  func.func @transform_13(%arg0: i32) -> (i32, i32) {
    %c0_i32 = arith.constant 0 : i32
    %c0_i32_0 = arith.constant 0 : i32
    return %arg0, %c0_i32 : i32, i32
  }
  func.func @transform_14(%arg0: i32) -> (i32, i32) {
    %c0_i32 = arith.constant 0 : i32
    %c0_i32_0 = arith.constant 0 : i32
    return %arg0, %c0_i32 : i32, i32
  }
}

</mosaic_0001>

<llo_original>
// kernel: autoencoder_forward.1
$region0: #{autoencoder_forward.1}
  #allocation0 [shape = 'u32[]', space=smem, size = 0x4, offset = 0x4, fixed_abs, tag = 'smem constant byte address 0x4 - core index']
  #allocation1 [shape = 'u32[72,128]{1,0:T(1,128)}', space=vmem, size = 0x9000, scoped, tag = 'internal scratch']
  %s0 = inlined_call_operand.vmem [shape: f32[16,200], index: 0, kind: input, shape index: {}]
  %s1 = inlined_call_operand.vmem [shape: bf16[200,100], index: 1, kind: input, shape index: {}]
  %s2 = inlined_call_operand.vmem [shape: f32[1,100], index: 2, kind: input, shape index: {}]
  %s3 = inlined_call_operand.vmem [shape: bf16[100,50], index: 3, kind: input, shape index: {}]
  %s4 = inlined_call_operand.vmem [shape: f32[1,50], index: 4, kind: input, shape index: {}]
  %s5 = inlined_call_operand.vmem [shape: bf16[50,10], index: 5, kind: input, shape index: {}]
  %s6 = inlined_call_operand.vmem [shape: f32[1,10], index: 6, kind: input, shape index: {}]
  %s7 = inlined_call_operand.vmem [shape: bf16[10,50], index: 7, kind: input, shape index: {}]
  %s8 = inlined_call_operand.vmem [shape: f32[1,50], index: 8, kind: input, shape index: {}]
  %s9 = inlined_call_operand.vmem [shape: bf16[50,100], index: 9, kind: input, shape index: {}]
  %s10 = inlined_call_operand.vmem [shape: f32[1,100], index: 10, kind: input, shape index: {}]
  %s11 = inlined_call_operand.vmem [shape: bf16[100,200], index: 11, kind: input, shape index: {}]
  %s12 = inlined_call_operand.vmem [shape: f32[1,200], index: 12, kind: input, shape index: {}]
  %s13 = inlined_call_operand.hbm [shape: f32[16,10], index: 13, kind: output, shape index: {0}]
  %s14 = inlined_call_operand.hbm [shape: f32[16,200], index: 14, kind: output, shape index: {1}]
  %15 = xla_tuple %s13, %s14
  %s16 = sld [smem:[#allocation0]]
  $region70: #{autoencoder_forward.1} parent=0
    _
  %s18 = ssub.s32 1, %s16
  %s19 = scalar_select 0, %s18, %s16
  $region1: #{autoencoder_forward.1} parent=0
    #allocation2 [shape = 'u8[8192]{0}', space=vmem, size = 0x2000, scoped, tag = 'output window, operand 0, single buffered']
    #allocation3 [shape = 's32[1]{0}', space=sflag, size = 0x4, scoped, tag = 'scoped memory for autoencoder_forward.1']
    #allocation4 [shape = 'u8[16384]{0}', space=vmem, size = 0x4000, scoped, tag = 'output window, operand 1, single buffered']
    #allocation5 [shape = 's32[1]{0}', space=sflag, size = 0x4, scoped, tag = 'scoped memory for autoencoder_forward.1']
    %20 = vsyncpa [#allocation3], 0
    %21 = vsyncpa [#allocation5], 0
    // Predicated region
    $region2: #{autoencoder_forward.1} parent=1 // pred_check
      _
    $region3: #{autoencoder_forward.1} parent=1 // pred_check_branch
      %23 = sbr.rel (0) target = $region5
    $region4: #{autoencoder_forward.1} parent=1 // pred_region
      _
    $region5: #{autoencoder_forward.1} parent=1 // pred_fallthru
      _
    // Predicated region
    $region6: #{autoencoder_forward.1} parent=1 // pred_check
      _
    $region7: #{autoencoder_forward.1} parent=1 // pred_check_branch
      %25 = sbr.rel (0) target = $region9
    $region8: #{autoencoder_forward.1} parent=1 // pred_region
      _
    $region9: #{autoencoder_forward.1} parent=1 // pred_fallthru
      _
    // Predicated region
    $region10: #{autoencoder_forward.1} parent=1 // pred_check
      _
    $region11: #{autoencoder_forward.1} parent=1 // pred_check_branch
      %27 = sbr.rel (0) target = $region13
    $region12: #{autoencoder_forward.1} parent=1 // pred_region
      _
    $region13: #{autoencoder_forward.1} parent=1 // pred_fallthru
      _
    // Predicated region
    $region14: #{autoencoder_forward.1} parent=1 // pred_check
      _
    $region15: #{autoencoder_forward.1} parent=1 // pred_check_branch
      %29 = sbr.rel (0) target = $region17
    $region16: #{autoencoder_forward.1} parent=1 // pred_region
      _
    $region17: #{autoencoder_forward.1} parent=1 // pred_fallthru
      _
    // Predicated region
    $region18: #{autoencoder_forward.1} parent=1 // pred_check
      _
    $region19: #{autoencoder_forward.1} parent=1 // pred_check_branch
      %31 = sbr.rel (0) target = $region21
    $region20: #{autoencoder_forward.1} parent=1 // pred_region
      _
    $region21: #{autoencoder_forward.1} parent=1 // pred_fallthru
      _
    // Predicated region
    $region22: #{autoencoder_forward.1} parent=1 // pred_check
      _
    $region23: #{autoencoder_forward.1} parent=1 // pred_check_branch
      %33 = sbr.rel (0) target = $region25
    $region24: #{autoencoder_forward.1} parent=1 // pred_region
      _
    $region25: #{autoencoder_forward.1} parent=1 // pred_fallthru
      _
    // Predicated region
    $region26: #{autoencoder_forward.1} parent=1 // pred_check
      _
    $region27: #{autoencoder_forward.1} parent=1 // pred_check_branch
      %35 = sbr.rel (0) target = $region29
    $region28: #{autoencoder_forward.1} parent=1 // pred_region
      _
    $region29: #{autoencoder_forward.1} parent=1 // pred_fallthru
      _
    // Predicated region
    $region30: #{autoencoder_forward.1} parent=1 // pred_check
      _
    $region31: #{autoencoder_forward.1} parent=1 // pred_check_branch
      %37 = sbr.rel (0) target = $region33
    $region32: #{autoencoder_forward.1} parent=1 // pred_region
      _
    $region33: #{autoencoder_forward.1} parent=1 // pred_fallthru
      _
    // Predicated region
    $region34: #{autoencoder_forward.1} parent=1 // pred_check
      _
    $region35: #{autoencoder_forward.1} parent=1 // pred_check_branch
      %39 = sbr.rel (0) target = $region37
    $region36: #{autoencoder_forward.1} parent=1 // pred_region
      _
    $region37: #{autoencoder_forward.1} parent=1 // pred_fallthru
      _
    // Predicated region
    $region38: #{autoencoder_forward.1} parent=1 // pred_check
      _
    $region39: #{autoencoder_forward.1} parent=1 // pred_check_branch
      %41 = sbr.rel (0) target = $region41
    $region40: #{autoencoder_forward.1} parent=1 // pred_region
      _
    $region41: #{autoencoder_forward.1} parent=1 // pred_fallthru
      _
    // Predicated region
    $region42: #{autoencoder_forward.1} parent=1 // pred_check
      _
    $region43: #{autoencoder_forward.1} parent=1 // pred_check_branch
      %43 = sbr.rel (0) target = $region45
    $region44: #{autoencoder_forward.1} parent=1 // pred_region
      _
    $region45: #{autoencoder_forward.1} parent=1 // pred_fallthru
      _
    // Predicated region
    $region46: #{autoencoder_forward.1} parent=1 // pred_check
      _
    $region47: #{autoencoder_forward.1} parent=1 // pred_check_branch
      %45 = sbr.rel (0) target = $region49
    $region48: #{autoencoder_forward.1} parent=1 // pred_region
      _
    $region49: #{autoencoder_forward.1} parent=1 // pred_fallthru
      _
    // Predicated region
    $region50: #{autoencoder_forward.1} parent=1 // pred_check
      _
    $region51: #{autoencoder_forward.1} parent=1 // pred_check_branch
      %47 = sbr.rel (0) target = $region53
    $region52: #{autoencoder_forward.1} parent=1 // pred_region
      _
    $region53: #{autoencoder_forward.1} parent=1 // pred_fallthru
      _
    %v49 = vld [vmem:[%s0] sm:$0xff]
    %v50 = vld [vmem:[%s0 + $0x8] sm:$0xff]
    %v51 = vld [vmem:[%s0 + $0x10] sm:$0xff]
    %v52 = vld [vmem:[%s0 + $0x18] sm:$0xff]
    %v53 = vpack.c.bf16 %v51, %v49
    %v54 = vpack.c.bf16 %v52, %v50
    %v55 = vld [vmem:[%s1] sm:$0xf]
    %v56 = vld [vmem:[%s1 + $0x4] sm:$0xf]
    %v57 = vld [vmem:[%s1 + $0x8] sm:$0xf]
    %v58 = vld [vmem:[%s1 + $0xc] sm:$0xf]
    %v59 = vld [vmem:[%s1 + $0x10] sm:$0xf]
    %v60 = vld [vmem:[%s1 + $0x14] sm:$0xf]
    %v61 = vld [vmem:[%s1 + $0x18] sm:$0xf]
    %v62 = vld [vmem:[%s1 + $0x1c] sm:$0xf]
    %v63 = vld [vmem:[%s1 + $0x20] sm:$0xf]
    %v64 = vld [vmem:[%s1 + $0x24] sm:$0xf]
    %v65 = vld [vmem:[%s1 + $0x28] sm:$0xf]
    %v66 = vld [vmem:[%s1 + $0x2c] sm:$0xf]
    %v67 = vld [vmem:[%s1 + $0x30] sm:$0xf]
    %v68 = vld [vmem:[%s1 + $0x34] sm:$0xf]
    %v69 = vld [vmem:[%s1 + $0x38] sm:$0xf]
    %v70 = vld [vmem:[%s1 + $0x3c] sm:$0xf]
    %v71 = vld [vmem:[%s1 + $0x40] sm:$0xf]
    %v72 = vld [vmem:[%s1 + $0x44] sm:$0xf]
    %v73 = vld [vmem:[%s1 + $0x48] sm:$0xf]
    %v74 = vld [vmem:[%s1 + $0x4c] sm:$0xf]
    %v75 = vld [vmem:[%s1 + $0x50] sm:$0xf]
    %v76 = vld [vmem:[%s1 + $0x54] sm:$0xf]
    %v77 = vld [vmem:[%s1 + $0x58] sm:$0xf]
    %v78 = vld [vmem:[%s1 + $0x5c] sm:$0xf]
    %v79 = vld [vmem:[%s1 + $0x60] sm:$0xf]
    %v80 = vld [vmem:[%s2] sm:$0x1]
    %v82 = vperm.slane %v80, 0
    %v109 = vunpack.c.l.b16 %v55
    %v110 = vunpack.c.l.b16 %v56
    %v111 = vunpack.c.l.b16 %v57
    %v112 = vunpack.c.l.b16 %v58
    %v113 = vunpack.c.l.b16 %v59
    %v114 = vunpack.c.l.b16 %v60
    %v115 = vunpack.c.l.b16 %v61
    %v116 = vunpack.c.l.b16 %v62
    %v117 = vunpack.c.l.b16 %v63
    %v118 = vunpack.c.l.b16 %v64
    %v119 = vunpack.c.l.b16 %v65
    %v120 = vunpack.c.l.b16 %v66
    %v121 = vunpack.c.l.b16 %v67
    %v122 = vunpack.c.l.b16 %v68
    %v123 = vunpack.c.l.b16 %v69
    %v124 = vunpack.c.l.b16 %v70
    %v125 = vunpack.c.l.b16 %v71
    %v126 = vunpack.c.l.b16 %v72
    %v127 = vunpack.c.l.b16 %v73
    %v128 = vunpack.c.l.b16 %v74
    %v129 = vunpack.c.l.b16 %v75
    %v130 = vunpack.c.l.b16 %v76
    %v131 = vunpack.c.l.b16 %v77
    %v132 = vunpack.c.l.b16 %v78
    %v133 = vunpack.c.l.b16 %v79
    %v134 = vpack.c.b16 %v110, %v109
    %v135 = vpack.c.b16 %v112, %v111
    %v136 = vpack.c.b16 %v114, %v113
    %v137 = vpack.c.b16 %v116, %v115
    %v138 = vpack.c.b16 %v118, %v117
    %v139 = vpack.c.b16 %v120, %v119
    %v140 = vpack.c.b16 %v122, %v121
    %v141 = vpack.c.b16 %v124, %v123
    %v142 = vpack.c.b16 %v126, %v125
    %v143 = vpack.c.b16 %v128, %v127
    %v144 = vpack.c.b16 %v130, %v129
    %v145 = vpack.c.b16 %v132, %v131
    %v146 = vpack.c.b16 %v133, %v133
    %vm159 = vcmask 588800
    %v161 = vsel %vm159, %v54, 0
    %vm163 = vcmask 1043456
    %v165 = vsel %vm163, %v146, 0
    %167 = vmatpush.bf16.msra.mxu0 %v141
    %168 = vmatpush.bf16.msra.mxu0 %v140
    %169 = vmatpush.bf16.msra.mxu0 %v139
    %170 = vmatpush.bf16.msra.mxu0 %v138
    %171 = vmatpush.bf16.msra.mxu0 %v137
    %172 = vmatpush.bf16.msra.mxu0 %v136
    %173 = vmatpush.bf16.msra.mxu0 %v135
    %174 = vmatpush.bf16.msra.mxu0 %v134
    %175 = vmatmul.bf16.gmra.mxu0 %v53
    %v176 = vpop.f32.mrf.mxu0
    %v177 = vadd.f32 %v82, %v176
    %v178 = vpop.f32.mrf.mxu0
    %v179 = vadd.f32 %v82, %v178
    %180 = vdwg.mxu0
    %181 = vmatpush.bf16.msra.mxu0 0
    %182 = vmatpush.bf16.msra.mxu0 0
    %183 = vmatpush.bf16.msra.mxu0 0
    %184 = vmatpush.bf16.msra.mxu0 %v165
    %185 = vmatpush.bf16.msra.mxu0 %v145
    %186 = vmatpush.bf16.msra.mxu0 %v144
    %187 = vmatpush.bf16.msra.mxu0 %v143
    %188 = vmatpush.bf16.msra.mxu0 %v142
    %189 = vmatmul.bf16.gmra.mxu0 %v161
    %v190 = vpop.f32.mrf.mxu0
    %v191 = vadd.f32 %v177, %v190
    %v192 = vpop.f32.mrf.mxu0
    %v193 = vadd.f32 %v179, %v192
    %194 = vdwg.mxu0
    %v195 = vtanh.pop %v191
    %v196 = vtanh.pop %v193
    %v197 = vpack.c.bf16 %v196, %v195
    %v198 = vld [vmem:[%s3] sm:$0xf]
    %v199 = vld [vmem:[%s3 + $0x4] sm:$0xf]
    %v200 = vld [vmem:[%s3 + $0x8] sm:$0xf]
    %v201 = vld [vmem:[%s3 + $0xc] sm:$0xf]
    %v202 = vld [vmem:[%s3 + $0x10] sm:$0xf]
    %v203 = vld [vmem:[%s3 + $0x14] sm:$0xf]
    %v204 = vld [vmem:[%s3 + $0x18] sm:$0xf]
    %v205 = vld [vmem:[%s3 + $0x1c] sm:$0xf]
    %v206 = vld [vmem:[%s3 + $0x20] sm:$0xf]
    %v207 = vld [vmem:[%s3 + $0x24] sm:$0xf]
    %v208 = vld [vmem:[%s3 + $0x28] sm:$0xf]
    %v209 = vld [vmem:[%s3 + $0x2c] sm:$0xf]
    %v210 = vld [vmem:[%s3 + $0x30] sm:$0x3]
    %v211 = vld [vmem:[%s4] sm:$0x1]
    %v213 = vperm.slane %v211, 0
    %v228 = vunpack.c.l.b16 %v198
    %v229 = vunpack.c.l.b16 %v199
    %v230 = vunpack.c.l.b16 %v200
    %v231 = vunpack.c.l.b16 %v201
    %v232 = vunpack.c.l.b16 %v202
    %v233 = vunpack.c.l.b16 %v203
    %v234 = vunpack.c.l.b16 %v204
    %v235 = vunpack.c.l.b16 %v205
    %v236 = vunpack.c.l.b16 %v206
    %v237 = vunpack.c.l.b16 %v207
    %v238 = vunpack.c.l.b16 %v208
    %v239 = vunpack.c.l.b16 %v209
    %v240 = vunpack.c.l.b16 %v210
    %v241 = vpack.c.b16 %v229, %v228
    %v242 = vpack.c.b16 %v231, %v230
    %v243 = vpack.c.b16 %v233, %v232
    %v244 = vpack.c.b16 %v235, %v234
    %v245 = vpack.c.b16 %v237, %v236
    %v246 = vpack.c.b16 %v239, %v238
    %v247 = vpack.c.b16 %v240, %v240
    %vm254 = vcmask 818176
    %v256 = vsel %vm254, %v197, 0
    %vm258 = vcmask 1041408
    %v260 = vsel %vm258, %v247, 0
    %262 = vmatpush.bf16.msra.mxu0 0
    %263 = vmatpush.bf16.msra.mxu0 %v260
    %264 = vmatpush.bf16.msra.mxu0 %v246
    %265 = vmatpush.bf16.msra.mxu0 %v245
    %266 = vmatpush.bf16.msra.mxu0 %v244
    %267 = vmatpush.bf16.msra.mxu0 %v243
    %268 = vmatpush.bf16.msra.mxu0 %v242
    %269 = vmatpush.bf16.msra.mxu0 %v241
    %270 = vmatmul.bf16.gmra.mxu0 %v256
    %v271 = vpop.f32.mrf.mxu0
    %v272 = vadd.f32 %v213, %v271
    %v273 = vpop.f32.mrf.mxu0
    %v274 = vadd.f32 %v213, %v273
    %275 = vdwg.mxu0
    %v276 = vtanh.pop %v272
    %v277 = vtanh.pop %v274
    %v278 = vpack.c.bf16 %v277, %v276
    %v279 = vld [vmem:[%s5] sm:$0xf]
    %v280 = vld [vmem:[%s5 + $0x4] sm:$0xf]
    %v281 = vld [vmem:[%s5 + $0x8] sm:$0xf]
    %v282 = vld [vmem:[%s5 + $0xc] sm:$0xf]
    %v283 = vld [vmem:[%s5 + $0x10] sm:$0xf]
    %v284 = vld [vmem:[%s5 + $0x14] sm:$0xf]
    %v285 = vld [vmem:[%s5 + $0x18] sm:$0x1]
    %v286 = vld [vmem:[%s6] sm:$0x1]
    %v288 = vperm.slane %v286, 0
    %v297 = vunpack.c.l.b16 %v279
    %v298 = vunpack.c.l.b16 %v280
    %v299 = vunpack.c.l.b16 %v281
    %v300 = vunpack.c.l.b16 %v282
    %v301 = vunpack.c.l.b16 %v283
    %v302 = vunpack.c.l.b16 %v284
    %v303 = vunpack.c.l.b16 %v285
    %v304 = vpack.c.b16 %v298, %v297
    %v305 = vpack.c.b16 %v300, %v299
    %v306 = vpack.c.b16 %v302, %v301
    %v307 = vpack.c.b16 %v303, %v303
    %vm311 = vcmask 408576
    %v313 = vsel %vm311, %v278, 0
    %vm315 = vcmask 1040384
    %v317 = vsel %vm315, %v307, 0
    %319 = vmatpush.bf16.msra.mxu0 0
    %320 = vmatpush.bf16.msra.mxu0 0
    %321 = vmatpush.bf16.msra.mxu0 0
    %322 = vmatpush.bf16.msra.mxu0 0
    %323 = vmatpush.bf16.msra.mxu0 %v317
    %324 = vmatpush.bf16.msra.mxu0 %v306
    %325 = vmatpush.bf16.msra.mxu0 %v305
    %326 = vmatpush.bf16.msra.mxu0 %v304
    %327 = vmatmul.bf16.gmra.mxu0 %v313
    %v328 = vpop.f32.mrf.mxu0
    %v329 = vadd.f32 %v288, %v328
    %v330 = vpop.f32.mrf.mxu0
    %v331 = vadd.f32 %v288, %v330
    %332 = vdwg.mxu0
    %v333 = vpack.c.bf16 %v331, %v329
    %v334 = vld [vmem:[%s7] sm:$0xf]
    %v335 = vld [vmem:[%s7 + $0x4] sm:$0x1]
    %v336 = vld [vmem:[%s8] sm:$0x1]
    %v338 = vperm.slane %v336, 0
    %v342 = vunpack.c.l.b16 %v334
    %v343 = vunpack.c.l.b16 %v335
    %v344 = vpack.c.b16 %v343, %v342
    %vm345 = vcmask 80896
    %v347 = vsel %vm345, %v333, 0
    %vm349 = vcmask 1044480
    %v351 = vsel %vm349, %v344, 0
    %353 = vmatpush.bf16.msra.mxu0 0
    %354 = vmatpush.bf16.msra.mxu0 0
    %355 = vmatpush.bf16.msra.mxu0 0
    %356 = vmatpush.bf16.msra.mxu0 0
    %357 = vmatpush.bf16.msra.mxu0 0
    %358 = vmatpush.bf16.msra.mxu0 0
    %359 = vmatpush.bf16.msra.mxu0 0
    %360 = vmatpush.bf16.msra.mxu0 %v351
    %361 = vmatmul.bf16.gmra.mxu0 %v347
    %v362 = vpop.f32.mrf.mxu0
    %v363 = vadd.f32 %v338, %v362
    %v364 = vpop.f32.mrf.mxu0
    %v365 = vadd.f32 %v338, %v364
    %366 = vdwg.mxu0
    %v367 = vtanh.pop %v363
    %v368 = vtanh.pop %v365
    %v369 = vpack.c.bf16 %v368, %v367
    %v370 = vld [vmem:[%s9] sm:$0xf]
    %v371 = vld [vmem:[%s9 + $0x4] sm:$0xf]
    %v372 = vld [vmem:[%s9 + $0x8] sm:$0xf]
    %v373 = vld [vmem:[%s9 + $0xc] sm:$0xf]
    %v374 = vld [vmem:[%s9 + $0x10] sm:$0xf]
    %v375 = vld [vmem:[%s9 + $0x14] sm:$0xf]
    %v376 = vld [vmem:[%s9 + $0x18] sm:$0x1]
    %v377 = vld [vmem:[%s10] sm:$0x1]
    %v379 = vperm.slane %v377, 0
    %v388 = vunpack.c.l.b16 %v370
    %v389 = vunpack.c.l.b16 %v371
    %v390 = vunpack.c.l.b16 %v372
    %v391 = vunpack.c.l.b16 %v373
    %v392 = vunpack.c.l.b16 %v374
    %v393 = vunpack.c.l.b16 %v375
    %v394 = vunpack.c.l.b16 %v376
    %v395 = vpack.c.b16 %v389, %v388
    %v396 = vpack.c.b16 %v391, %v390
    %v397 = vpack.c.b16 %v393, %v392
    %v398 = vpack.c.b16 %v394, %v394
    %v403 = vsel %vm311, %v369, 0
    %v406 = vsel %vm315, %v398, 0
    %408 = vmatpush.bf16.msra.mxu0 0
    %409 = vmatpush.bf16.msra.mxu0 0
    %410 = vmatpush.bf16.msra.mxu0 0
    %411 = vmatpush.bf16.msra.mxu0 0
    %412 = vmatpush.bf16.msra.mxu0 %v406
    %413 = vmatpush.bf16.msra.mxu0 %v397
    %414 = vmatpush.bf16.msra.mxu0 %v396
    %415 = vmatpush.bf16.msra.mxu0 %v395
    %416 = vmatmul.bf16.gmra.mxu0 %v403
    %v417 = vpop.f32.mrf.mxu0
    %v418 = vadd.f32 %v379, %v417
    %v419 = vpop.f32.mrf.mxu0
    %v420 = vadd.f32 %v379, %v419
    %421 = vdwg.mxu0
    %v422 = vtanh.pop %v418
    %v423 = vtanh.pop %v420
    %v424 = vpack.c.bf16 %v423, %v422
    %v425 = vld [vmem:[%s11] sm:$0xff]
    %v426 = vld [vmem:[%s11 + $0x8] sm:$0xff]
    %v427 = vld [vmem:[%s11 + $0x10] sm:$0xff]
    %v428 = vld [vmem:[%s11 + $0x18] sm:$0xff]
    %v429 = vld [vmem:[%s11 + $0x20] sm:$0xff]
    %v430 = vld [vmem:[%s11 + $0x28] sm:$0xff]
    %v431 = vld [vmem:[%s11 + $0x30] sm:$0xff]
    %v432 = vld [vmem:[%s11 + $0x38] sm:$0xff]
    %v433 = vld [vmem:[%s11 + $0x40] sm:$0xff]
    %v434 = vld [vmem:[%s11 + $0x48] sm:$0xff]
    %v435 = vld [vmem:[%s11 + $0x50] sm:$0xff]
    %v436 = vld [vmem:[%s11 + $0x58] sm:$0xff]
    %v437 = vld [vmem:[%s11 + $0x60] sm:$0x33]
    %v438 = vld [vmem:[%s12] sm:$0x3]
    %v440 = vperm.slane %v438, 0
    %v441 = vperm.slane %v438, 1
    %v457 = vunpack.c.l.b16 %v425
    %v458 = vunpack.c.h.b16 %v425
    %v459 = vunpack.c.l.b16 %v426
    %v460 = vunpack.c.h.b16 %v426
    %v461 = vunpack.c.l.b16 %v427
    %v462 = vunpack.c.h.b16 %v427
    %v463 = vunpack.c.l.b16 %v428
    %v464 = vunpack.c.h.b16 %v428
    %v465 = vunpack.c.l.b16 %v429
    %v466 = vunpack.c.h.b16 %v429
    %v467 = vunpack.c.l.b16 %v430
    %v468 = vunpack.c.h.b16 %v430
    %v469 = vunpack.c.l.b16 %v431
    %v470 = vunpack.c.h.b16 %v431
    %v471 = vunpack.c.l.b16 %v432
    %v472 = vunpack.c.h.b16 %v432
    %v473 = vunpack.c.l.b16 %v433
    %v474 = vunpack.c.h.b16 %v433
    %v475 = vunpack.c.l.b16 %v434
    %v476 = vunpack.c.h.b16 %v434
    %v477 = vunpack.c.l.b16 %v435
    %v478 = vunpack.c.h.b16 %v435
    %v479 = vunpack.c.l.b16 %v436
    %v480 = vunpack.c.h.b16 %v436
    %v481 = vunpack.c.l.b16 %v437
    %v482 = vunpack.c.h.b16 %v437
    %v483 = vpack.c.b16 %v459, %v457
    %v484 = vpack.c.b16 %v460, %v458
    %v485 = vpack.c.b16 %v463, %v461
    %v486 = vpack.c.b16 %v464, %v462
    %v487 = vpack.c.b16 %v467, %v465
    %v488 = vpack.c.b16 %v468, %v466
    %v489 = vpack.c.b16 %v471, %v469
    %v490 = vpack.c.b16 %v472, %v470
    %v491 = vpack.c.b16 %v475, %v473
    %v492 = vpack.c.b16 %v476, %v474
    %v493 = vpack.c.b16 %v479, %v477
    %v494 = vpack.c.b16 %v480, %v478
    %v495 = vpack.c.b16 %v481, %v481
    %v496 = vpack.c.b16 %v482, %v482
    %v510 = vsel %vm254, %v424, 0
    %v513 = vsel %vm258, %v495, 0
    %v516 = vsel %vm258, %v496, 0
    %518 = vmatpush.bf16.msra.mxu0 0
    %519 = vmatpush.bf16.msra.mxu0 %v513
    %520 = vmatpush.bf16.msra.mxu0 %v493
    %521 = vmatpush.bf16.msra.mxu0 %v491
    %522 = vmatpush.bf16.msra.mxu0 %v489
    %523 = vmatpush.bf16.msra.mxu0 %v487
    %524 = vmatpush.bf16.msra.mxu0 %v485
    %525 = vmatpush.bf16.msra.mxu0 %v483
    %526 = vmatmul.bf16.gmra.mxu0 %v510
    %v527 = vpop.f32.mrf.mxu0
    %v528 = vadd.f32 %v440, %v527
    %v529 = vpop.f32.mrf.mxu0
    %v530 = vadd.f32 %v440, %v529
    %531 = vdwg.mxu0
    %532 = vmatpush.bf16.msra.mxu0 0
    %533 = vmatpush.bf16.msra.mxu0 %v516
    %534 = vmatpush.bf16.msra.mxu0 %v494
    %535 = vmatpush.bf16.msra.mxu0 %v492
    %536 = vmatpush.bf16.msra.mxu0 %v490
    %537 = vmatpush.bf16.msra.mxu0 %v488
    %538 = vmatpush.bf16.msra.mxu0 %v486
    %539 = vmatpush.bf16.msra.mxu0 %v484
    %540 = vmatmul.bf16.gmra.mxu0 %v510
    %v541 = vpop.f32.mrf.mxu0
    %v542 = vadd.f32 %v441, %v541
    %v543 = vpop.f32.mrf.mxu0
    %v544 = vadd.f32 %v441, %v543
    %545 = vdwg.mxu0
    %546 = vst.msk [vmem:[#allocation2] sm:$0xff] %vm345, %v329
    %547 = vst.msk [vmem:[#allocation2 + $0x8] sm:$0xff] %vm345, %v331
    %548 = vst [vmem:[#allocation4] sm:$0xff] %v528
    %549 = vst.msk [vmem:[#allocation4 + $0x8] sm:$0xff] %vm159, %v542
    %550 = vst [vmem:[#allocation4 + $0x10] sm:$0xff] %v530
    %551 = vst.msk [vmem:[#allocation4 + $0x18] sm:$0xff] %vm159, %v544
    // Predicated region
    $region54: #{autoencoder_forward.1} parent=1 // pred_check
      _
    $region55: #{autoencoder_forward.1} parent=1 // pred_check_branch
      %553 = sbr.rel (0) target = $region57
    $region56: #{autoencoder_forward.1} parent=1 // pred_region
      %555 = vsyncadd [#allocation3], 0
      %s556 = sshll.u32 [#allocation2], 4
      %s557 = int_to_ptr.vmem [resolvable:$true] %s556
      %s558 = sshll.u32 %s13, 4
      %s559 = int_to_ptr.hbm [resolvable:$true] %s558
      %564 = dma.vmem_to_hbm [thread:$0]  %s557, 256, %s559, [#allocation3], 128, 128, 8
    $region57: #{autoencoder_forward.1} parent=1 // pred_fallthru
      _
    // Predicated region
    $region58: #{autoencoder_forward.1} parent=1 // pred_check
      _
    $region59: #{autoencoder_forward.1} parent=1 // pred_check_branch
      %566 = sbr.rel (0) target = $region61
    $region60: #{autoencoder_forward.1} parent=1 // pred_region
      %568 = vsyncadd [#allocation5], 0
      %s569 = sshll.u32 [#allocation4], 4
      %s570 = int_to_ptr.vmem [resolvable:$true] %s569
      %s571 = sshll.u32 %s14, 4
      %s572 = int_to_ptr.hbm [resolvable:$true] %s571
      %577 = dma.vmem_to_hbm [thread:$0]  %s570, 512, %s572, [#allocation5], 256, 256, 16
    $region61: #{autoencoder_forward.1} parent=1 // pred_fallthru
      _
    // Predicated region
    $region62: #{autoencoder_forward.1} parent=1 // pred_check
      _
    $region63: #{autoencoder_forward.1} parent=1 // pred_check_branch
      %579 = sbr.rel (0) target = $region65
    $region64: #{autoencoder_forward.1} parent=1 // pred_region
      %581 = dma.done [#allocation3], 256
    $region65: #{autoencoder_forward.1} parent=1 // pred_fallthru
      _
    // Predicated region
    $region66: #{autoencoder_forward.1} parent=1 // pred_check
      _
    $region67: #{autoencoder_forward.1} parent=1 // pred_check_branch
      %583 = sbr.rel (0) target = $region69
    $region68: #{autoencoder_forward.1} parent=1 // pred_region
      %585 = dma.done [#allocation5], 512
    $region69: #{autoencoder_forward.1} parent=1 // pred_fallthru
      _
    %586 = vsyncpa [#allocation3], 1
    %587 = vsyncpa [#allocation5], 1

</llo_original>
